<compile_context>
chip_gen: v6e
topology: v6e:2x2x1
jax: 0.10.0
libtpu: 0.0.40
codegen_flags: <defaults>
</compile_context>

<pallas_src>
import functools

import jax
import jax.numpy as jnp
from jax.experimental import pallas as pl
from jax.experimental.pallas import tpu as pltpu


# --------------------------------------------------------------------------- #
# tiling helper
# --------------------------------------------------------------------------- #
def _tile(n: int, cap: int, align: int = 128) -> int:
    """Largest `align`-multiple <= cap dividing n, else full extent.

    Only returns multiples of `align` (falling back to multiples of 8) or the
    full extent, so BlockSpec shapes stay (8, 128)-friendly and grids divide
    exactly (no silently-dropped remainders).
    """
    if n <= cap:
        return n
    for a in dict.fromkeys((align, 8)):
        t = (cap // a) * a
        while t >= a:
            if n % t == 0:
                return t
            t -= a
    return n


# --------------------------------------------------------------------------- #
# 1. tiled matmul kernel (fused QKV projection and Wo projection)
# --------------------------------------------------------------------------- #
def _matmul_kernel(a_ref, b_ref, o_ref, acc_ref):
    @pl.when(pl.program_id(2) == 0)
    def _():
        acc_ref[...] = jnp.zeros_like(acc_ref)

    acc_ref[...] += jnp.dot(a_ref[...], b_ref[...],
                            preferred_element_type=jnp.float32)

    @pl.when(pl.program_id(2) == pl.num_programs(2) - 1)
    def _():
        o_ref[...] = acc_ref[...].astype(o_ref.dtype)


def matmul(a, b, *, tm_cap=256, tn_cap=512, tk_cap=512):
    """a: (M, K), b: (K, N) -> (M, N); bf16 operands, f32 MXU accumulation."""
    M, K = a.shape
    K2, N = b.shape
    assert K == K2
    tm = _tile(M, tm_cap, 8)
    tn = _tile(N, tn_cap, 128)
    tk = _tile(K, tk_cap, 128)
    return pl.pallas_call(
        _matmul_kernel,
        out_shape=jax.ShapeDtypeStruct((M, N), a.dtype),
        grid_spec=pltpu.PrefetchScalarGridSpec(
            num_scalar_prefetch=0,
            grid=(M // tm, N // tn, K // tk),
            in_specs=[
                pl.BlockSpec((tm, tk), lambda i, j, k: (i, k)),
                pl.BlockSpec((tk, tn), lambda i, j, k: (k, j)),
            ],
            out_specs=pl.BlockSpec((tm, tn), lambda i, j, k: (i, j)),
            scratch_shapes=[pltpu.VMEM((tm, tn), jnp.float32)],
        ),
        compiler_params=pltpu.CompilerParams(
            dimension_semantics=("parallel", "parallel", "arbitrary")),
    )(a, b)


# --------------------------------------------------------------------------- #
# 2. K rotary kernel (rotate-half form; reads K columns straight out of the
#    fused QKV slab via the lane-block offset, writes a (B, S, H*D) slab that
#    feeds both the flash kernel and the KV-cache "keys" output)
# --------------------------------------------------------------------------- #
def _rotary_kernel(x_ref, cos_ref, sin_ref, o_ref):
    x = x_ref[0].astype(jnp.float32)                 # (ts, D), f32 RoPE math
    half = x.shape[-1] // 2
    rolled = pltpu.roll(x, shift=half, axis=1)       # swap halves (self-inverse)
    o_ref[0] = (x * cos_ref[...] + rolled * sin_ref[...]).astype(o_ref.dtype)


def rotary_from_columns(x3, cos, sin, *, n_heads, head_dim, col_off, ts_cap=512):
    """x3: (B, S, C); rotates the D-wide column blocks [col_off+h for h in heads].

    Grid is (seq-tiles, B, H) with the seq axis outermost so the cos/sin block
    index is constant across the inner (B, H) sweep and is not re-DMA'd.
    """
    B, S, _ = x3.shape
    H, D = n_heads, head_dim
    ts = _tile(S, ts_cap, 8)
    return pl.pallas_call(
        _rotary_kernel,
        out_shape=jax.ShapeDtypeStruct((B, S, H * D), x3.dtype),
        grid_spec=pltpu.PrefetchScalarGridSpec(
            num_scalar_prefetch=0,
            grid=(S // ts, B, H),
            in_specs=[
                pl.BlockSpec((1, ts, D), lambda si, b, h: (b, si, col_off + h)),
                pl.BlockSpec((ts, D), lambda si, b, h: (si, 0)),
                pl.BlockSpec((ts, D), lambda si, b, h: (si, 0)),
            ],
            out_specs=pl.BlockSpec((1, ts, D), lambda si, b, h: (b, si, h)),
        ),
        compiler_params=pltpu.CompilerParams(
            dimension_semantics=("parallel", "parallel", "parallel")),
    )(x3, cos, sin)


# --------------------------------------------------------------------------- #
# 3. flash attention kernel (online softmax, fused+scaled Q rotary, causal
#    block skipping with DMA clamp, diagonal-only masking)
# --------------------------------------------------------------------------- #
def _flash_kernel(q_ref, k_ref, v_ref, cosq_ref, sinq_ref, o_ref,
                  qrot_sc, m_sc, l_sc, acc_sc, *, causal):
    qi = pl.program_id(2)
    ki = pl.program_id(3)

    @pl.when(ki == 0)
    def _():
        # rotate-half RoPE on the q tile in f32; 1/sqrt(D) is pre-folded into
        # cos/sin so no per-step score scaling is needed.
        q = q_ref[0].astype(jnp.float32)                       # (tq, D)
        half = q.shape[-1] // 2
        q_rot = q * cosq_ref[...] + pltpu.roll(q, shift=half, axis=1) * sinq_ref[...]
        qrot_sc[...] = q_rot.astype(qrot_sc.dtype)
        m_sc[...] = jnp.full_like(m_sc, -1e30)
        l_sc[...] = jnp.zeros_like(l_sc)
        acc_sc[...] = jnp.zeros_like(acc_sc)

    def update(mask_diag):
        k = k_ref[0]                                            # (tk, D)
        s = jax.lax.dot_general(qrot_sc[...], k, (((1,), (1,)), ((), ())),
                                preferred_element_type=jnp.float32)
        if mask_diag:
            # diagonal block only (tq == tk, qi == ki): local row >= local col
            row = jax.lax.broadcasted_iota(jnp.int32, s.shape, 0)
            col = jax.lax.broadcasted_iota(jnp.int32, s.shape, 1)
            s = jnp.where(row >= col, s, -1e30)
        s_max = s.max(axis=-1, keepdims=True)                   # (tq, 1)
        m_prev = m_sc[...]                                      # (tq, D) lane-replicated
        m_new = jnp.maximum(m_prev, s_max)                      # (tq, D)
        alpha = jnp.exp(m_prev - m_new)                         # (tq, D)
        p = jnp.exp(s - m_new[:, :1])                           # (tq, tk)
        l_sc[...] = alpha * l_sc[...] + p.sum(axis=-1, keepdims=True)
        acc_sc[...] = alpha * acc_sc[...] + jnp.dot(
            p.astype(v_ref.dtype), v_ref[0], preferred_element_type=jnp.float32)
        m_sc[...] = m_new

    if causal:
        pl.when(ki == qi)(lambda: update(True))    # diagonal: masked
        pl.when(ki < qi)(lambda: update(False))    # below diag: no mask work
        # ki > qi: fully masked -> compute skipped AND DMA skipped (index clamp)
    else:
        update(False)

    @pl.when(ki == pl.num_programs(3) - 1)
    def _():
        inv_l = pl.reciprocal(l_sc[...], approx=True)           # EUP, not VPU divide
        o_ref[0] = (acc_sc[...] * inv_l).astype(o_ref.dtype)


def flash_attention(q_arr, k_arr, v_arr, cos_q, sin_q, *, n_heads, head_dim,
                    q_off, k_off, v_off, causal, tq_cap=512, tk_cap=512):
    """q_arr/k_arr/v_arr: (B, Sq|Sk, *) slabs; heads are D-wide column blocks
    at block offsets q_off+h / k_off+h / v_off+h.  Output: (B, Sq, H*D)."""
    B, Sq, _ = q_arr.shape
    _, Sk, _ = k_arr.shape
    H, D = n_heads, head_dim
    tq = _tile(Sq, tq_cap, 8)
    tk = _tile(Sk, tk_cap, 128)
    if causal:
        assert Sq == Sk, "causal path assumes q_len == kv_len"
        tq = tk = min(tq, _tile(Sk, tk_cap, 8))

    if causal:
        # clamp masked upper-triangle steps onto the already-resident diagonal
        # block -> Pallas skips the K/V DMA for them.
        def kv_idx(b, h, qi, ki):
            return (b, jnp.minimum(ki, qi))
    else:
        def kv_idx(b, h, qi, ki):
            return (b, ki)

    kernel = functools.partial(_flash_kernel, causal=causal)
    return pl.pallas_call(
        kernel,
        out_shape=jax.ShapeDtypeStruct((B, Sq, H * D), q_arr.dtype),
        grid_spec=pltpu.PrefetchScalarGridSpec(
            num_scalar_prefetch=0,
            grid=(B, H, Sq // tq, Sk // tk),
            in_specs=[
                pl.BlockSpec((1, tq, D), lambda b, h, qi, ki: (b, qi, q_off + h)),
                pl.BlockSpec((1, tk, D),
                             lambda b, h, qi, ki: (*kv_idx(b, h, qi, ki), k_off + h)),
                pl.BlockSpec((1, tk, D),
                             lambda b, h, qi, ki: (*kv_idx(b, h, qi, ki), v_off + h)),
                pl.BlockSpec((tq, D), lambda b, h, qi, ki: (qi, 0)),
                pl.BlockSpec((tq, D), lambda b, h, qi, ki: (qi, 0)),
            ],
            out_specs=pl.BlockSpec((1, tq, D), lambda b, h, qi, ki: (b, qi, h)),
            scratch_shapes=[
                pltpu.VMEM((tq, D), q_arr.dtype),    # rotated+scaled q (compute dtype)
                pltpu.VMEM((tq, D), jnp.float32),    # m (lane-replicated, no masked stores)
                pltpu.VMEM((tq, D), jnp.float32),    # l (lane-replicated)
                pltpu.VMEM((tq, D), jnp.float32),    # acc
            ],
        ),
        compiler_params=pltpu.CompilerParams(
            dimension_semantics=("parallel", "parallel", "parallel", "arbitrary")),
    )(q_arr, k_arr, v_arr, cos_q, sin_q)


# --------------------------------------------------------------------------- #
# parameter preprocessing (one-time, not in the per-call hot path)
# --------------------------------------------------------------------------- #
def _per_head_deinterleave(D):
    half = jnp.arange(D // 2)
    return jnp.concatenate([2 * half, 2 * half + 1])


def _deinterleave_perm(H, D):
    return (jnp.arange(H)[:, None] * D +
            _per_head_deinterleave(D)[None, :]).reshape(-1)


def _reinterleave_last(t):
    *lead, D = t.shape
    return t.reshape(*lead, 2, D // 2).swapaxes(-1, -2).reshape(*lead, D)


def init_attention_params(wq, wk, wv, wo, n_heads, compute_dtype=jnp.bfloat16):
    """PyTorch-layout weights (out, in) -> kernel-friendly bf16 operands.

    Done once at init: per-head de-interleave of Wq/Wk output features (so
    rotary becomes a single lane roll), transpose, Wq/Wk/Wv concatenation into
    one fused QKV matmul operand, and cast to the bf16 MXU compute dtype.
    """
    HD, dim = wq.shape
    D = HD // n_heads
    perm = _deinterleave_perm(n_heads, D)
    w_qkv_t = jnp.concatenate([wq[perm].T, wk[perm].T, wv.T], axis=1)   # (dim, 3*HD)
    return {"w_qkv_t": w_qkv_t.astype(compute_dtype),
            "wo_t": wo.T.astype(compute_dtype),                         # (HD, dim)
            "n_heads": n_heads, "head_dim": D}


def _rope_cos_sin(freqs_cis):
    """freqs_cis: (S, D/2) complex -> f32 cos/sin tables for rotate-half form."""
    cos_h = jnp.real(freqs_cis).astype(jnp.float32)
    sin_h = jnp.imag(freqs_cis).astype(jnp.float32)
    cos = jnp.concatenate([cos_h, cos_h], axis=-1)       # (S, D)
    sin = jnp.concatenate([-sin_h, sin_h], axis=-1)      # (S, D), sign folded in
    return cos, sin


# --------------------------------------------------------------------------- #
# full Attention.forward
# --------------------------------------------------------------------------- #
def attention_forward(x, params, freqs_cis, *, is_causal=True, cache=None):
    B, S, dim = x.shape
    H, D = params["n_heads"], params["head_dim"]
    HD = H * D
    M = B * S
    cdt = params["w_qkv_t"].dtype                         # bf16 compute dtype

    # ---- fused QKV projection (one tiled bf16 MXU matmul) --------------------
    qkv = matmul(x.astype(cdt).reshape(M, dim), params["w_qkv_t"])   # (M, 3*HD)
    qkv3 = qkv.reshape(B, S, 3 * HD)                      # free reshape, no transpose

    # ---- rotary tables (f32; Q tables pre-scaled by 1/sqrt(D)) ---------------
    cos, sin = _rope_cos_sin(freqs_cis)                   # (S, D) f32
    scale = 1.0 / (float(D) ** 0.5)
    cos_q, sin_q = cos * scale, sin * scale

    # ---- K rotary (single pass; also the new cache-keys content) -------------
    k_rot = rotary_from_columns(qkv3, cos, sin, n_heads=H, head_dim=D,
                                col_off=H)                # (B, S, HD), de-interleaved

    if cache is None:
        # flash reads Q and V straight out of the QKV slab (head = column block),
        # Q rotary+scale fused in-kernel; output lands in (B, S, H*D) directly.
        attn = flash_attention(qkv3, k_rot, qkv3, cos_q, sin_q,
                               n_heads=H, head_dim=D,
                               q_off=0, k_off=0, v_off=2 * H,
                               causal=is_causal)          # (B, S, HD)
        v_new = qkv3[:, :, 2 * HD:]
        keys = _reinterleave_last(k_rot.reshape(B, S, H, D))
        values = v_new.reshape(B, S, H, D)
    else:
        # TODO(synk): causal masking against a pre-existing KV cache (decode
        # path mask alignment) is not implemented; use is_causal=False there.
        assert not is_causal
        cache_k, cache_v = cache                          # (B, Sp, H, D), interleaved
        Sp = cache_k.shape[1]
        per_head = _per_head_deinterleave(D)
        ck = cache_k.astype(cdt)[..., per_head].reshape(B, Sp, HD)
        cv = cache_v.astype(cdt).reshape(B, Sp, HD)
        v_new = qkv3[:, :, 2 * HD:]
        k_full = jnp.concatenate([ck, k_rot], axis=1)     # (B, Sp+S, HD)
        v_full = jnp.concatenate([cv, v_new], axis=1)
        attn = flash_attention(qkv3, k_full, v_full, cos_q, sin_q,
                               n_heads=H, head_dim=D,
                               q_off=0, k_off=0, v_off=0,
                               causal=False)
        keys = jnp.concatenate(
            [cache_k.astype(cdt), _reinterleave_last(k_rot.reshape(B, S, H, D))], axis=1)
        values = jnp.concatenate(
            [cache_v.astype(cdt), v_new.reshape(B, S, H, D)], axis=1)

    # ---- output projection (contiguous (M, HD) read, no transpose) -----------
    out = matmul(attn.reshape(M, HD), params["wo_t"]).reshape(B, S, dim)

    return out.astype(x.dtype), (keys.astype(x.dtype), values.astype(x.dtype))


# --------------------------------------------------------------------------- #
# pure-JAX reference (mirrors the PyTorch module exactly, f32 HIGHEST)
# --------------------------------------------------------------------------- #
def precompute_freqs_cis(head_dim, seq_len, theta=10000.0):
    freqs = 1.0 / (theta ** (jnp.arange(0, head_dim, 2, dtype=jnp.float32) / head_dim))
    ang = jnp.outer(jnp.arange(seq_len, dtype=jnp.float32), freqs)   # (S, D/2)
    return jax.lax.complex(jnp.cos(ang), jnp.sin(ang))


def _reference(x, wq, wk, wv, wo, freqs_cis, n_heads, is_causal):
    B, S, dim = x.shape
    H, D = n_heads, dim // n_heads
    hi = jax.lax.Precision.HIGHEST
    xq = jnp.dot(x, wq.T, precision=hi).reshape(B, S, H, D)
    xk = jnp.dot(x, wk.T, precision=hi).reshape(B, S, H, D)
    xv = jnp.dot(x, wv.T, precision=hi).reshape(B, S, H, D)

    def rot(t):
        tc = t.reshape(B, S, H, D // 2, 2)
        tc = jax.lax.complex(tc[..., 0], tc[..., 1])
        out = tc * freqs_cis[None, :, None, :]
        return jnp.stack([jnp.real(out), jnp.imag(out)], axis=-1).reshape(B, S, H, D)

    xq, xk = rot(xq), rot(xk)
    q, k, v = (t.transpose(0, 2, 1, 3) for t in (xq, xk, xv))
    s = jnp.einsum("bhqd,bhkd->bhqk", q, k, precision=hi) / jnp.sqrt(jnp.float32(D))
    if is_causal:
        mask = jnp.tril(jnp.ones((S, S), dtype=bool))
        s = jnp.where(mask[None, None], s, -jnp.inf)
    p = jax.nn.softmax(s, axis=-1)
    o = jnp.einsum("bhqk,bhkd->bhqd", p, v, precision=hi)
    o = o.transpose(0, 2, 1, 3).reshape(B, S, H * D)
    return jnp.dot(o, wo.T, precision=hi), xk, xv


# --------------------------------------------------------------------------- #
if __name__ == "__main__":
    B, S, dim, n_heads = 2, 16, 256, 2
    D = dim // n_heads                                   # 128 (lane-dense)

    key = jax.random.PRNGKey(0)
    kx, kq, kk, kv, ko = jax.random.split(key, 5)
    w_scale = 0.02
    x = jax.random.normal(kx, (B, S, dim), dtype=jnp.float32)
    wq = jax.random.normal(kq, (n_heads * D, dim), dtype=jnp.float32) * w_scale
    wk = jax.random.normal(kk, (n_heads * D, dim), dtype=jnp.float32) * w_scale
    wv = jax.random.normal(kv, (n_heads * D, dim), dtype=jnp.float32) * w_scale
    wo = jax.random.normal(ko, (dim, n_heads * D), dtype=jnp.float32) * w_scale
    freqs_cis = precompute_freqs_cis(D, S)               # (S, D/2) complex64

    params = init_attention_params(wq, wk, wv, wo, n_heads)

    # bf16 compute vs f32 reference -> modest tolerance
    ATOL = RTOL = 2e-2

    # ---- causal prefill path --------------------------------------------------
    out, (keys, values) = attention_forward(x, params, freqs_cis, is_causal=True)
    out, keys, values = jax.block_until_ready((out, keys, values))
    ref_out, ref_keys, ref_values = _reference(x, wq, wk, wv, wo, freqs_cis,
                                               n_heads, is_causal=True)
    assert out.shape == (B, S, dim)
    assert keys.shape == (B, S, n_heads, D)
    assert values.shape == (B, S, n_heads, D)
    assert jnp.allclose(out, ref_out, atol=ATOL, rtol=RTOL), "causal output mismatch"
    assert jnp.allclose(keys, ref_keys, atol=ATOL, rtol=RTOL), "keys mismatch"
    assert jnp.allclose(values, ref_values, atol=ATOL, rtol=RTOL), "values mismatch"

    # ---- non-causal path -------------------------------------------------------
    out_nc, _ = attention_forward(x, params, freqs_cis, is_causal=False)
    out_nc = jax.block_until_ready(out_nc)
    ref_out_nc, _, _ = _reference(x, wq, wk, wv, wo, freqs_cis,
                                  n_heads, is_causal=False)
    assert jnp.allclose(out_nc, ref_out_nc, atol=ATOL, rtol=RTOL), \
        "non-causal output mismatch"

    print("KERNEL_OK")
</pallas_src>

<mosaic_0001>
module attributes {stable_mosaic.version = 11 : i64} {
  func.func @_matmul_kernel(%arg0: i32, %arg1: i32, %arg2: i32, %arg3: memref<32x256xbf16, #tpu.memory_space<vmem>>, %arg4: memref<256x384xbf16, #tpu.memory_space<vmem>>, %arg5: memref<32x384xbf16, #tpu.memory_space<vmem>>, %arg6: memref<32x384xf32, #tpu.memory_space<vmem>>) attributes {dimension_semantics = [#tpu.dimension_semantics<parallel>, #tpu.dimension_semantics<parallel>, #tpu.dimension_semantics<arbitrary>], iteration_bounds = array<i64: 1, 2, 1>, scalar_prefetch = 0 : i64, scratch_operands = 1 : i64, tpu.core_type = #tpu.core_type<tc>, window_params = [{transform_indices = @transform_0, window_bounds = array<i64: 32, 256>}, {transform_indices = @transform_1, window_bounds = array<i64: 256, 384>}, {transform_indices = @transform_2, window_bounds = array<i64: 32, 384>}]} {
    %c0_i32 = arith.constant 0 : i32
    %0 = arith.cmpi eq, %arg2, %c0_i32 : i32
    %1 = arith.extui %0 : i1 to i32
    %c0_i32_0 = arith.constant 0 : i32
    %2 = arith.cmpi ne, %1, %c0_i32_0 : i32
    scf.if %2 {
      %cst_10 = arith.constant 0.000000e+00 : f32
      %12 = vector.broadcast %cst_10 : f32 to vector<32x384xf32>
      %c0_11 = arith.constant 0 : index
      %c0_12 = arith.constant 0 : index
      %13 = vector.load %arg6[%c0_11, %c0_12] : memref<32x384xf32, #tpu.memory_space<vmem>>, vector<32x384xf32>
      tpu.vector_store %arg6[%c0_11, %c0_12], %12 {strides = array<i32>} : memref<32x384xf32, #tpu.memory_space<vmem>>, vector<32x384xf32>,
    } else {
    }
    %c0 = arith.constant 0 : index
    %c0_1 = arith.constant 0 : index
    %3 = vector.load %arg6[%c0, %c0_1] : memref<32x384xf32, #tpu.memory_space<vmem>>, vector<32x384xf32>
    %c0_2 = arith.constant 0 : index
    %c0_3 = arith.constant 0 : index
    %4 = vector.load %arg3[%c0_2, %c0_3] : memref<32x256xbf16, #tpu.memory_space<vmem>>, vector<32x256xbf16>
    %c0_4 = arith.constant 0 : index
    %c0_5 = arith.constant 0 : index
    %5 = vector.load %arg4[%c0_4, %c0_5] : memref<256x384xbf16, #tpu.memory_space<vmem>>, vector<256x384xbf16>
    %cst = arith.constant dense<0.000000e+00> : vector<32x384xf32>
    %6 = tpu.matmul %4, %5, %cst {dimension_numbers = #tpu.dot_dimension_numbers<[1], [0], [0], [1], [0, 0, 1, 1], [], []>} : vector<32x256xbf16>, vector<256x384xbf16>, vector<32x384xf32> -> vector<32x384xf32>
    %7 = arith.addf %3, %6 : vector<32x384xf32>
    %c0_6 = arith.constant 0 : index
    %c0_7 = arith.constant 0 : index
    %8 = vector.load %arg6[%c0_6, %c0_7] : memref<32x384xf32, #tpu.memory_space<vmem>>, vector<32x384xf32>
    tpu.vector_store %arg6[%c0_6, %c0_7], %7 {strides = array<i32>} : memref<32x384xf32, #tpu.memory_space<vmem>>, vector<32x384xf32>,
    %c0_i32_8 = arith.constant 0 : i32
    %9 = arith.cmpi eq, %arg2, %c0_i32_8 : i32
    %10 = arith.extui %9 : i1 to i32
    %c0_i32_9 = arith.constant 0 : i32
    %11 = arith.cmpi ne, %10, %c0_i32_9 : i32
    scf.if %11 {
      %c0_10 = arith.constant 0 : index
      %c0_11 = arith.constant 0 : index
      %12 = vector.load %arg6[%c0_10, %c0_11] : memref<32x384xf32, #tpu.memory_space<vmem>>, vector<32x384xf32>
      %13 = arith.truncf %12 : vector<32x384xf32> to vector<32x384xbf16>
      %c0_12 = arith.constant 0 : index
      %c0_13 = arith.constant 0 : index
      %14 = vector.load %arg5[%c0_12, %c0_13] : memref<32x384xbf16, #tpu.memory_space<vmem>>, vector<32x384xbf16>
      tpu.vector_store %arg5[%c0_12, %c0_13], %13 {strides = array<i32>} : memref<32x384xbf16, #tpu.memory_space<vmem>>, vector<32x384xbf16>,
    } else {
    }
    return
  }
  func.func @transform_0(%arg0: i32, %arg1: i32, %arg2: i32) -> (i32, i32) {
    %c0_i32 = arith.constant 0 : i32
    return %arg0, %arg2 : i32, i32
  }
  func.func @transform_1(%arg0: i32, %arg1: i32, %arg2: i32) -> (i32, i32) {
    %c0_i32 = arith.constant 0 : i32
    return %arg2, %arg1 : i32, i32
  }
  func.func @transform_2(%arg0: i32, %arg1: i32, %arg2: i32) -> (i32, i32) {
    %c0_i32 = arith.constant 0 : i32
    return %arg0, %arg1 : i32, i32
  }
}

</mosaic_0001>

<llo_original>
// kernel: tpu_custom_call.1
$region0: #{tpu_custom_call.1}
  #allocation0 [shape = 'u32[]', space=smem, size = 0x4, offset = 0x4, fixed_abs, tag = 'smem constant byte address 0x4 - core index']
  #allocation1 [shape = 'u32[144,128]{1,0:T(1,128)}', space=vmem, size = 0x12000, scoped, tag = 'internal scratch']
  #allocation2 [shape = 'f32[32,384]{1,0:T(8,128)}', space=vmem, size = 0xc000, scoped, tag = 'scratch operand']
  %s0 = inlined_call_operand.hbm [shape: bf16[32,256], index: 0, kind: input, shape index: {}]
  %s1 = inlined_call_operand.hbm [shape: bf16[256,768], index: 1, kind: input, shape index: {}]
  %s2 = inlined_call_operand.hbm [shape: bf16[32,768], index: 2, kind: output, shape index: {}]
  %s3 = sld [smem:[#allocation0]]
  $region57: #{tpu_custom_call.1} parent=0
    _
  %s5 = ssub.s32 1, %s3
  %s6 = scalar_select 0, %s5, %s3
  $region1: #{tpu_custom_call.1} parent=0
    #allocation3 [shape = 'u8[16384]{0}', space=vmem, size = 0x4000, scoped, tag = 'input window, operand 0, single buffered']
    #allocation4 [shape = 's32[2]{0}', space=sflag, size = 0x8, scoped, tag = 'scoped memory for tpu_custom_call.1']
    #allocation5 [shape = 's32[2]{0}', space=sflag, size = 0x8, scoped, tag = 'scoped memory for tpu_custom_call.1']
    #allocation6 [shape = 'u8[393216]{0}', space=vmem, size = 0x60000, scoped, tag = 'input window, operand 1']
    #allocation7 [shape = 's32[2]{0}', space=sflag, size = 0x8, scoped, tag = 'scoped memory for tpu_custom_call.1']
    #allocation8 [shape = 'u8[49152]{0}', space=vmem, size = 0xc000, scoped, tag = 'output window, operand 0']
    %7 = vsyncpa [#allocation4], 0
    %8 = vsyncpa [#allocation7], 0
    %s9 = scalar_lea.sflag [#allocation7], 1
    %10 = vsyncpa %s9, 0
    %11 = vsyncpa [#allocation5], 0
    %s12 = scalar_lea.sflag [#allocation5], 1
    %13 = vsyncpa %s12, 0
    loop: start=0, step=1, limit=4
    $region2: #{tpu_custom_call.1} parent=1 // loop_pre_header
      _
    $region3: #{tpu_custom_call.1} parent=1 // loop_header
      %s15 = sphi 0, %s19
      %p16 = scmp.ge.s32.totalorder %s15, 4
      %s22 = sphi 0, %s41
      %s23 = sphi 0, %s37
      %s24 = sphi 0, %s33
      %s25 = sphi 0, %s22
      %s26 = sphi 0, %s23
      %s27 = sphi 0, %s24
      %s28 = sphi 0, %s25
      %s29 = sphi 0, %s26
      %s30 = sphi 0, %s27
      %s46 = sphi 0, %s48
      %s49 = sphi 0, %s46
      %s50 = sphi 0, %s49
      %s66 = sphi 0, %s50
      %s74 = sphi 0, %s76
      %s77 = sphi 0, %s74
      %s78 = sphi 0, %s77
      %s94 = sphi 0, %s78
      %s102 = sphi 0, %s104
      %s105 = sphi 0, %s102
      %s106 = sphi 0, %s105
      %s122 = sphi 0, %s106
    $region4: #{tpu_custom_call.1} parent=1 // loop_header_branch
      %18 = sbr.rel (%p16) target = $region8
    $region5: #{tpu_custom_call.1} parent=1 // loop_body
      %s20 = ssub.s32 %s15, 1
      %s21 = ssub.s32 %s15, 2
      %s31 = sadd.s32 1, %s24
      %p32 = scmp.ge.s32.totalorder %s31, 1
      %s33 = scalar_select %p32, 0, %s31
      %s34 = sadd.s32 1, %s23
      %s35 = scalar_select %p32, %s34, %s23
      %p36 = scmp.ge.s32.totalorder %s35, 2
      %s37 = scalar_select %p36, 0, %s35
      %s38 = sadd.s32 1, %s22
      %s39 = scalar_select %p36, %s38, %s22
      %p40 = scmp.ge.s32.totalorder %s39, 1
      %s41 = scalar_select %p40, 0, %s39
      %s42 = ssub.s32 %s22, %s41
      %s43 = ssub.s32 %s24, %s33
      %s44 = sor.u32 %s42, %s43
      %p45 = scmp.eq.s32.totalorder %s44, 0
      %s47 = sadd.s32 %s46, 1
      %s48 = scalar_select %p45, %s46, %s47
      %p51 = pneg %p45
      %p52 = scmp.eq.s32.totalorder %s15, 1
      %p53 = por %p51, %p52
      %p54 = scmp.ne.s32.totalorder %s46, %s49
      %p55 = scmp.eq.s32.totalorder %s15, 0
      %p56 = por %p54, %p55
      %p57 = scmp.ne.s32.totalorder %s46, %s49
      %p58 = scmp.eq.s32.totalorder %s20, 1
      %p59 = por %p57, %p58
      %p60 = scmp.ne.s32.totalorder %s49, %s50
      %p61 = scmp.eq.s32.totalorder %s20, 0
      %p62 = por %p60, %p61
      %p63 = scmp.ne.s32.totalorder %s49, %s50
      %p64 = scmp.eq.s32.totalorder %s21, 1
      %p65 = por %p63, %p64
      %p67 = scmp.ne.s32.totalorder %s50, %s66
      %p68 = scmp.eq.s32.totalorder %s21, 0
      %p69 = por %p67, %p68
      %s70 = ssub.s32 %s24, %s33
      %s71 = ssub.s32 %s23, %s37
      %s72 = sor.u32 %s70, %s71
      %p73 = scmp.eq.s32.totalorder %s72, 0
      %s75 = sadd.s32 %s74, 1
      %s76 = scalar_select %p73, %s74, %s75
      %p79 = pneg %p73
      %p80 = scmp.eq.s32.totalorder %s15, 1
      %p81 = por %p79, %p80
      %p82 = scmp.ne.s32.totalorder %s74, %s77
      %p83 = scmp.eq.s32.totalorder %s15, 0
      %p84 = por %p82, %p83
      %p85 = scmp.ne.s32.totalorder %s74, %s77
      %p86 = scmp.eq.s32.totalorder %s20, 1
      %p87 = por %p85, %p86
      %p88 = scmp.ne.s32.totalorder %s77, %s78
      %p89 = scmp.eq.s32.totalorder %s20, 0
      %p90 = por %p88, %p89
      %p91 = scmp.ne.s32.totalorder %s77, %s78
      %p92 = scmp.eq.s32.totalorder %s21, 1
      %p93 = por %p91, %p92
      %p95 = scmp.ne.s32.totalorder %s78, %s94
      %p96 = scmp.eq.s32.totalorder %s21, 0
      %p97 = por %p95, %p96
      %s98 = ssub.s32 %s22, %s41
      %s99 = ssub.s32 %s23, %s37
      %s100 = sor.u32 %s98, %s99
      %p101 = scmp.eq.s32.totalorder %s100, 0
      %s103 = sadd.s32 %s102, 1
      %s104 = scalar_select %p101, %s102, %s103
      %p107 = pneg %p101
      %p108 = scmp.eq.s32.totalorder %s15, 1
      %p109 = por %p107, %p108
      %p110 = scmp.ne.s32.totalorder %s102, %s105
      %p111 = scmp.eq.s32.totalorder %s15, 0
      %p112 = por %p110, %p111
      %p113 = scmp.ne.s32.totalorder %s102, %s105
      %p114 = scmp.eq.s32.totalorder %s20, 1
      %p115 = por %p113, %p114
      %p116 = scmp.ne.s32.totalorder %s105, %s106
      %p117 = scmp.eq.s32.totalorder %s20, 0
      %p118 = por %p116, %p117
      %p119 = scmp.ne.s32.totalorder %s105, %s106
      %p120 = scmp.eq.s32.totalorder %s21, 1
      %p121 = por %p119, %p120
      %p123 = scmp.ne.s32.totalorder %s106, %s122
      %p124 = scmp.eq.s32.totalorder %s21, 0
      %p125 = por %p123, %p124
      %p126 = scmp.le.s32.totalorder 1, %s15
      %p127 = scmp.lt.s32.totalorder %s15, 3
      %p128 = pnand %p126, %p127
      %p129 = pneg %p128
      // Predicated region
      $region9: #{tpu_custom_call.1} parent=5 // pred_check
        _
      $region10: #{tpu_custom_call.1} parent=5 // pred_check_branch
        %131 = sbr.rel (%p128) target = $region12
      $region11: #{tpu_custom_call.1} parent=5 // pred_region
        %s132 = ssub.s32 %s15, 1
        // Predicated region
        $region13: #{tpu_custom_call.1} parent=11 // pred_check
          %p133 = pneg %p62
        $region14: #{tpu_custom_call.1} parent=11 // pred_check_branch
          %135 = sbr.rel (%p133) target = $region16
        $region15: #{tpu_custom_call.1} parent=11 // pred_region
          %s136 = smul.u32 4, %s25
          %s137 = smul.u32 2, %s27
          %s139 = ssub.s32 512, 512
          %140 = vsyncadd [#allocation4], %s139
          %s141 = smul.addr %s136, 2
          %s142 = sadd.s32 %s137, %s141
          %s143 = smul.addr %s142, 64
          %s144 = scalar_lea.hbm %s0, %s143
          %s145 = sshll.u32 [#allocation3], 4
          %s146 = int_to_ptr.vmem [resolvable:$true] %s145
          %151 = dma.hbm_to_vmem [thread:$0]  %s144, 512, %s146, [#allocation4], 128, 128, 8
        $region16: #{tpu_custom_call.1} parent=11 // pred_fallthru
          _
      $region12: #{tpu_custom_call.1} parent=5 // pred_fallthru
        _
      %p152 = scmp.lt.s32.totalorder %s15, 2
      // Predicated region
      $region17: #{tpu_custom_call.1} parent=5 // pred_check
        %p153 = pneg %p152
      $region18: #{tpu_custom_call.1} parent=5 // pred_check_branch
        %155 = sbr.rel (%p153) target = $region20
      $region19: #{tpu_custom_call.1} parent=5 // pred_region
        // Predicated region
        $region21: #{tpu_custom_call.1} parent=19 // pred_check
          %p156 = pneg %p84
        $region22: #{tpu_custom_call.1} parent=19 // pred_check_branch
          %158 = sbr.rel (%p156) target = $region24
        $region23: #{tpu_custom_call.1} parent=19 // pred_region
          %s159 = sand.u32 %s74, 1
          %s160 = scalar_lea.sflag [#allocation7], %s159
          %s161 = sand.u32 %s74, 1
          %s162 = smul.addr %s161, 384
          %s163 = scalar_lea.vmem [#allocation6], %s162
          %s164 = smul.u32 32, %s24
          %s165 = smul.u32 3, %s23
          %s167 = ssub.s32 6144, 6144
          %168 = vsyncadd %s160, %s167
          %s169 = smul.addr %s164, 6
          %s170 = sadd.s32 %s165, %s169
          %s171 = smul.addr %s170, 64
          %s172 = scalar_lea.hbm %s1, %s171
          %s173 = sshll.u32 %s163, 4
          %s174 = int_to_ptr.vmem [resolvable:$true] %s173
          %179 = dma.hbm_to_vmem [thread:$0]  %s172, 6144, %s174, %s160, 384, 192, 12
        $region24: #{tpu_custom_call.1} parent=19 // pred_fallthru
          _
      $region20: #{tpu_custom_call.1} parent=5 // pred_fallthru
        _
      %p180 = scmp.le.s32.totalorder 1, %s15
      %p181 = scmp.lt.s32.totalorder %s15, 3
      %p182 = pnand %p180, %p181
      %p183 = pneg %p182
      // Predicated region
      $region25: #{tpu_custom_call.1} parent=5 // pred_check
        _
      $region26: #{tpu_custom_call.1} parent=5 // pred_check_branch
        %185 = sbr.rel (%p182) target = $region28
      $region27: #{tpu_custom_call.1} parent=5 // pred_region
        %s186 = ssub.s32 %s15, 1
        // Predicated region
        $region29: #{tpu_custom_call.1} parent=27 // pred_check
          %p187 = pneg %p62
        $region30: #{tpu_custom_call.1} parent=27 // pred_check_branch
          %189 = sbr.rel (%p187) target = $region32
        $region31: #{tpu_custom_call.1} parent=27 // pred_region
          %190 = dma.done [#allocation4], 512
        $region32: #{tpu_custom_call.1} parent=27 // pred_fallthru
          _
        %s191 = sand.u32 %s77, 1
        %s192 = scalar_lea.sflag [#allocation7], %s191
        %s193 = sand.u32 %s77, 1
        %s194 = smul.addr %s193, 384
        %s195 = scalar_lea.vmem [#allocation6], %s194
        // Predicated region
        $region33: #{tpu_custom_call.1} parent=27 // pred_check
          %p196 = pneg %p90
        $region34: #{tpu_custom_call.1} parent=27 // pred_check_branch
          %198 = sbr.rel (%p196) target = $region36
        $region35: #{tpu_custom_call.1} parent=27 // pred_region
          %199 = dma.done %s192, 6144
        $region36: #{tpu_custom_call.1} parent=27 // pred_fallthru
          _
        %p200 = pneg %p62
        %p201 = pneg %p59
        %s202 = sand.u32 %s77, 1
        %s203 = scalar_lea.sflag [#allocation7], %s202
        %s204 = sand.u32 %s77, 1
        %s205 = smul.addr %s204, 384
        %s206 = scalar_lea.vmem [#allocation6], %s205
        %p207 = pneg %p90
        %p208 = pneg %p87
        %p209 = pneg %p118
        %p210 = pneg %p115
        %s211 = sand.u32 %s105, 1
        %s212 = scalar_lea.sflag [#allocation5], %s211
        %s213 = sand.u32 %s105, 1
        %s214 = smul.addr %s213, 48
        %s215 = scalar_lea.vmem [#allocation8], %s214
        %s216 = smul.u32 4, %s25
        %s217 = smul.u32 2, %s27
        %s218 = smul.u32 32, %s27
        %s219 = smul.u32 3, %s26
        %s220 = smul.u32 4, %s25
        %s221 = smul.u32 3, %s26
        %p223 = scmp.eq.s32.totalorder %s27, 0
        // Predicated region
        $region37: #{tpu_custom_call.1} parent=27 // pred_check
          %p224 = pneg %p223
        $region38: #{tpu_custom_call.1} parent=27 // pred_check_branch
          %226 = sbr.rel (%p224) target = $region40
        $region39: #{tpu_custom_call.1} parent=27 // pred_region
          %227 = vst [vmem:[#allocation2] sm:$0xff] 0.0
          %228 = vst [vmem:[#allocation2 + $0x8] sm:$0xff] 0.0
          %229 = vst [vmem:[#allocation2 + $0x10] sm:$0xff] 0.0
          %230 = vst [vmem:[#allocation2 + $0x18] sm:$0xff] 0.0
          %231 = vst [vmem:[#allocation2 + $0x20] sm:$0xff] 0.0
          %232 = vst [vmem:[#allocation2 + $0x28] sm:$0xff] 0.0
          %233 = vst [vmem:[#allocation2 + $0x30] sm:$0xff] 0.0
          %234 = vst [vmem:[#allocation2 + $0x38] sm:$0xff] 0.0
          %235 = vst [vmem:[#allocation2 + $0x40] sm:$0xff] 0.0
          %236 = vst [vmem:[#allocation2 + $0x48] sm:$0xff] 0.0
          %237 = vst [vmem:[#allocation2 + $0x50] sm:$0xff] 0.0
          %238 = vst [vmem:[#allocation2 + $0x58] sm:$0xff] 0.0
        $region40: #{tpu_custom_call.1} parent=27 // pred_fallthru
          _
        %v239 = vld [vmem:[#allocation2] sm:$0xff]
        %v240 = vld [vmem:[#allocation2 + $0x8] sm:$0xff]
        %v241 = vld [vmem:[#allocation2 + $0x10] sm:$0xff]
        %v242 = vld [vmem:[#allocation2 + $0x18] sm:$0xff]
        %v243 = vld [vmem:[#allocation2 + $0x20] sm:$0xff]
        %v244 = vld [vmem:[#allocation2 + $0x28] sm:$0xff]
        %v245 = vld [vmem:[#allocation2 + $0x30] sm:$0xff]
        %v246 = vld [vmem:[#allocation2 + $0x38] sm:$0xff]
        %v247 = vld [vmem:[#allocation2 + $0x40] sm:$0xff]
        %v248 = vld [vmem:[#allocation2 + $0x48] sm:$0xff]
        %v249 = vld [vmem:[#allocation2 + $0x50] sm:$0xff]
        %v250 = vld [vmem:[#allocation2 + $0x58] sm:$0xff]
        %v251 = vld [vmem:[#allocation3] sm:$0xff]
        %v252 = vld [vmem:[#allocation3 + $0x8] sm:$0xff]
        %v253 = vld [vmem:[#allocation3 + $0x10] sm:$0xff]
        %v254 = vld [vmem:[#allocation3 + $0x18] sm:$0xff]
        %v255 = vld [vmem:[%s195] sm:$0xff]
        %v256 = vld [vmem:[%s195 + $0x8] sm:$0xf]
        %v257 = vld [vmem:[%s195 + $0xc] sm:$0xff]
        %v258 = vld [vmem:[%s195 + $0x14] sm:$0xf]
        %v259 = vld [vmem:[%s195 + $0x18] sm:$0xff]
        %v260 = vld [vmem:[%s195 + $0x20] sm:$0xf]
        %v261 = vld [vmem:[%s195 + $0x24] sm:$0xff]
        %v262 = vld [vmem:[%s195 + $0x2c] sm:$0xf]
        %v263 = vld [vmem:[%s195 + $0x30] sm:$0xff]
        %v264 = vld [vmem:[%s195 + $0x38] sm:$0xf]
        %v265 = vld [vmem:[%s195 + $0x3c] sm:$0xff]
        %v266 = vld [vmem:[%s195 + $0x44] sm:$0xf]
        %v267 = vld [vmem:[%s195 + $0x48] sm:$0xff]
        %v268 = vld [vmem:[%s195 + $0x50] sm:$0xf]
        %v269 = vld [vmem:[%s195 + $0x54] sm:$0xff]
        %v270 = vld [vmem:[%s195 + $0x5c] sm:$0xf]
        %v271 = vld [vmem:[%s195 + $0x60] sm:$0xff]
        %v272 = vld [vmem:[%s195 + $0x68] sm:$0xf]
        %v273 = vld [vmem:[%s195 + $0x6c] sm:$0xff]
        %v274 = vld [vmem:[%s195 + $0x74] sm:$0xf]
        %v275 = vld [vmem:[%s195 + $0x78] sm:$0xff]
        %v276 = vld [vmem:[%s195 + $0x80] sm:$0xf]
        %v277 = vld [vmem:[%s195 + $0x84] sm:$0xff]
        %v278 = vld [vmem:[%s195 + $0x8c] sm:$0xf]
        %v279 = vld [vmem:[%s195 + $0x90] sm:$0xff]
        %v280 = vld [vmem:[%s195 + $0x98] sm:$0xf]
        %v281 = vld [vmem:[%s195 + $0x9c] sm:$0xff]
        %v282 = vld [vmem:[%s195 + $0xa4] sm:$0xf]
        %v283 = vld [vmem:[%s195 + $0xa8] sm:$0xff]
        %v284 = vld [vmem:[%s195 + $0xb0] sm:$0xf]
        %v285 = vld [vmem:[%s195 + $0xb4] sm:$0xff]
        %v286 = vld [vmem:[%s195 + $0xbc] sm:$0xf]
        %v287 = vld [vmem:[%s195 + $0xc0] sm:$0xff]
        %v288 = vld [vmem:[%s195 + $0xc8] sm:$0xf]
        %v289 = vld [vmem:[%s195 + $0xcc] sm:$0xff]
        %v290 = vld [vmem:[%s195 + $0xd4] sm:$0xf]
        %v291 = vld [vmem:[%s195 + $0xd8] sm:$0xff]
        %v292 = vld [vmem:[%s195 + $0xe0] sm:$0xf]
        %v293 = vld [vmem:[%s195 + $0xe4] sm:$0xff]
        %v294 = vld [vmem:[%s195 + $0xec] sm:$0xf]
        %v295 = vld [vmem:[%s195 + $0xf0] sm:$0xff]
        %v296 = vld [vmem:[%s195 + $0xf8] sm:$0xf]
        %v297 = vld [vmem:[%s195 + $0xfc] sm:$0xff]
        %v298 = vld [vmem:[%s195 + $0x104] sm:$0xf]
        %v299 = vld [vmem:[%s195 + $0x108] sm:$0xff]
        %v300 = vld [vmem:[%s195 + $0x110] sm:$0xf]
        %v301 = vld [vmem:[%s195 + $0x114] sm:$0xff]
        %v302 = vld [vmem:[%s195 + $0x11c] sm:$0xf]
        %v303 = vld [vmem:[%s195 + $0x120] sm:$0xff]
        %v304 = vld [vmem:[%s195 + $0x128] sm:$0xf]
        %v305 = vld [vmem:[%s195 + $0x12c] sm:$0xff]
        %v306 = vld [vmem:[%s195 + $0x134] sm:$0xf]
        %v307 = vld [vmem:[%s195 + $0x138] sm:$0xff]
        %v308 = vld [vmem:[%s195 + $0x140] sm:$0xf]
        %v309 = vld [vmem:[%s195 + $0x144] sm:$0xff]
        %v310 = vld [vmem:[%s195 + $0x14c] sm:$0xf]
        %v311 = vld [vmem:[%s195 + $0x150] sm:$0xff]
        %v312 = vld [vmem:[%s195 + $0x158] sm:$0xf]
        %v313 = vld [vmem:[%s195 + $0x15c] sm:$0xff]
        %v314 = vld [vmem:[%s195 + $0x164] sm:$0xf]
        %v315 = vld [vmem:[%s195 + $0x168] sm:$0xff]
        %v316 = vld [vmem:[%s195 + $0x170] sm:$0xf]
        %v317 = vld [vmem:[%s195 + $0x174] sm:$0xff]
        %v318 = vld [vmem:[%s195 + $0x17c] sm:$0xf]
        %v323 = vunpack.c.l.b16 %v251
        %v324 = vunpack.c.h.b16 %v251
        %v325 = vunpack.c.l.b16 %v252
        %v326 = vunpack.c.h.b16 %v252
        %v327 = vunpack.c.l.b16 %v253
        %v328 = vunpack.c.h.b16 %v253
        %v329 = vunpack.c.l.b16 %v254
        %v330 = vunpack.c.h.b16 %v254
        %v331 = vpack.c.b16 %v325, %v323
        %v332 = vpack.c.b16 %v326, %v324
        %v333 = vpack.c.b16 %v329, %v327
        %v334 = vpack.c.b16 %v330, %v328
        %v403 = vunpack.c.l.b16 %v255
        %v404 = vunpack.c.h.b16 %v255
        %v405 = vunpack.c.l.b16 %v256
        %v406 = vunpack.c.l.b16 %v257
        %v407 = vunpack.c.h.b16 %v257
        %v408 = vunpack.c.l.b16 %v258
        %v409 = vunpack.c.l.b16 %v259
        %v410 = vunpack.c.h.b16 %v259
        %v411 = vunpack.c.l.b16 %v260
        %v412 = vunpack.c.l.b16 %v261
        %v413 = vunpack.c.h.b16 %v261
        %v414 = vunpack.c.l.b16 %v262
        %v415 = vunpack.c.l.b16 %v263
        %v416 = vunpack.c.h.b16 %v263
        %v417 = vunpack.c.l.b16 %v264
        %v418 = vunpack.c.l.b16 %v265
        %v419 = vunpack.c.h.b16 %v265
        %v420 = vunpack.c.l.b16 %v266
        %v421 = vunpack.c.l.b16 %v267
        %v422 = vunpack.c.h.b16 %v267
        %v423 = vunpack.c.l.b16 %v268
        %v424 = vunpack.c.l.b16 %v269
        %v425 = vunpack.c.h.b16 %v269
        %v426 = vunpack.c.l.b16 %v270
        %v427 = vunpack.c.l.b16 %v271
        %v428 = vunpack.c.h.b16 %v271
        %v429 = vunpack.c.l.b16 %v272
        %v430 = vunpack.c.l.b16 %v273
        %v431 = vunpack.c.h.b16 %v273
        %v432 = vunpack.c.l.b16 %v274
        %v433 = vunpack.c.l.b16 %v275
        %v434 = vunpack.c.h.b16 %v275
        %v435 = vunpack.c.l.b16 %v276
        %v436 = vunpack.c.l.b16 %v277
        %v437 = vunpack.c.h.b16 %v277
        %v438 = vunpack.c.l.b16 %v278
        %v439 = vunpack.c.l.b16 %v279
        %v440 = vunpack.c.h.b16 %v279
        %v441 = vunpack.c.l.b16 %v280
        %v442 = vunpack.c.l.b16 %v281
        %v443 = vunpack.c.h.b16 %v281
        %v444 = vunpack.c.l.b16 %v282
        %v445 = vunpack.c.l.b16 %v283
        %v446 = vunpack.c.h.b16 %v283
        %v447 = vunpack.c.l.b16 %v284
        %v448 = vunpack.c.l.b16 %v285
        %v449 = vunpack.c.h.b16 %v285
        %v450 = vunpack.c.l.b16 %v286
        %v451 = vunpack.c.l.b16 %v287
        %v452 = vunpack.c.h.b16 %v287
        %v453 = vunpack.c.l.b16 %v288
        %v454 = vunpack.c.l.b16 %v289
        %v455 = vunpack.c.h.b16 %v289
        %v456 = vunpack.c.l.b16 %v290
        %v457 = vunpack.c.l.b16 %v291
        %v458 = vunpack.c.h.b16 %v291
        %v459 = vunpack.c.l.b16 %v292
        %v460 = vunpack.c.l.b16 %v293
        %v461 = vunpack.c.h.b16 %v293
        %v462 = vunpack.c.l.b16 %v294
        %v463 = vunpack.c.l.b16 %v295
        %v464 = vunpack.c.h.b16 %v295
        %v465 = vunpack.c.l.b16 %v296
        %v466 = vunpack.c.l.b16 %v297
        %v467 = vunpack.c.h.b16 %v297
        %v468 = vunpack.c.l.b16 %v298
        %v469 = vunpack.c.l.b16 %v299
        %v470 = vunpack.c.h.b16 %v299
        %v471 = vunpack.c.l.b16 %v300
        %v472 = vunpack.c.l.b16 %v301
        %v473 = vunpack.c.h.b16 %v301
        %v474 = vunpack.c.l.b16 %v302
        %v475 = vunpack.c.l.b16 %v303
        %v476 = vunpack.c.h.b16 %v303
        %v477 = vunpack.c.l.b16 %v304
        %v478 = vunpack.c.l.b16 %v305
        %v479 = vunpack.c.h.b16 %v305
        %v480 = vunpack.c.l.b16 %v306
        %v481 = vunpack.c.l.b16 %v307
        %v482 = vunpack.c.h.b16 %v307
        %v483 = vunpack.c.l.b16 %v308
        %v484 = vunpack.c.l.b16 %v309
        %v485 = vunpack.c.h.b16 %v309
        %v486 = vunpack.c.l.b16 %v310
        %v487 = vunpack.c.l.b16 %v311
        %v488 = vunpack.c.h.b16 %v311
        %v489 = vunpack.c.l.b16 %v312
        %v490 = vunpack.c.l.b16 %v313
        %v491 = vunpack.c.h.b16 %v313
        %v492 = vunpack.c.l.b16 %v314
        %v493 = vunpack.c.l.b16 %v315
        %v494 = vunpack.c.h.b16 %v315
        %v495 = vunpack.c.l.b16 %v316
        %v496 = vunpack.c.l.b16 %v317
        %v497 = vunpack.c.h.b16 %v317
        %v498 = vunpack.c.l.b16 %v318
        %v499 = vpack.c.b16 %v406, %v403
        %v500 = vpack.c.b16 %v407, %v404
        %v501 = vpack.c.b16 %v408, %v405
        %v502 = vpack.c.b16 %v412, %v409
        %v503 = vpack.c.b16 %v413, %v410
        %v504 = vpack.c.b16 %v414, %v411
        %v505 = vpack.c.b16 %v418, %v415
        %v506 = vpack.c.b16 %v419, %v416
        %v507 = vpack.c.b16 %v420, %v417
        %v508 = vpack.c.b16 %v424, %v421
        %v509 = vpack.c.b16 %v425, %v422
        %v510 = vpack.c.b16 %v426, %v423
        %v511 = vpack.c.b16 %v430, %v427
        %v512 = vpack.c.b16 %v431, %v428
        %v513 = vpack.c.b16 %v432, %v429
        %v514 = vpack.c.b16 %v436, %v433
        %v515 = vpack.c.b16 %v437, %v434
        %v516 = vpack.c.b16 %v438, %v435
        %v517 = vpack.c.b16 %v442, %v439
        %v518 = vpack.c.b16 %v443, %v440
        %v519 = vpack.c.b16 %v444, %v441
        %v520 = vpack.c.b16 %v448, %v445
        %v521 = vpack.c.b16 %v449, %v446
        %v522 = vpack.c.b16 %v450, %v447
        %v523 = vpack.c.b16 %v454, %v451
        %v524 = vpack.c.b16 %v455, %v452
        %v525 = vpack.c.b16 %v456, %v453
        %v526 = vpack.c.b16 %v460, %v457
        %v527 = vpack.c.b16 %v461, %v458
        %v528 = vpack.c.b16 %v462, %v459
        %v529 = vpack.c.b16 %v466, %v463
        %v530 = vpack.c.b16 %v467, %v464
        %v531 = vpack.c.b16 %v468, %v465
        %v532 = vpack.c.b16 %v472, %v469
        %v533 = vpack.c.b16 %v473, %v470
        %v534 = vpack.c.b16 %v474, %v471
        %v535 = vpack.c.b16 %v478, %v475
        %v536 = vpack.c.b16 %v479, %v476
        %v537 = vpack.c.b16 %v480, %v477
        %v538 = vpack.c.b16 %v484, %v481
        %v539 = vpack.c.b16 %v485, %v482
        %v540 = vpack.c.b16 %v486, %v483
        %v541 = vpack.c.b16 %v490, %v487
        %v542 = vpack.c.b16 %v491, %v488
        %v543 = vpack.c.b16 %v492, %v489
        %v544 = vpack.c.b16 %v496, %v493
        %v545 = vpack.c.b16 %v497, %v494
        %v546 = vpack.c.b16 %v498, %v495
        %595 = vmatprep.subr.bf16.mxu0 %v521
        %596 = vmatpush1.bf16.msra.mxu0 %v520
        %597 = vmatprep.subr.bf16.mxu0 %v518
        %598 = vmatpush1.bf16.msra.mxu0 %v517
        %599 = vmatprep.subr.bf16.mxu0 %v515
        %600 = vmatpush1.bf16.msra.mxu0 %v514
        %601 = vmatprep.subr.bf16.mxu0 %v512
        %602 = vmatpush1.bf16.msra.mxu0 %v511
        %603 = vmatprep.subr.bf16.mxu0 %v509
        %604 = vmatpush1.bf16.msra.mxu0 %v508
        %605 = vmatprep.subr.bf16.mxu0 %v506
        %606 = vmatpush1.bf16.msra.mxu0 %v505
        %607 = vmatprep.subr.bf16.mxu0 %v503
        %608 = vmatpush1.bf16.msra.mxu0 %v502
        %609 = vmatprep.subr.bf16.mxu0 %v500
        %610 = vmatpush1.bf16.msra.mxu0 %v499
        %611 = vmatprep.subr.bf16.mxu0 %v545
        %612 = vmatpush2.bf16.msra.mxu0 %v544
        %613 = vmatprep.subr.bf16.mxu0 %v542
        %614 = vmatpush2.bf16.msra.mxu0 %v541
        %615 = vmatprep.subr.bf16.mxu0 %v539
        %616 = vmatpush2.bf16.msra.mxu0 %v538
        %617 = vmatprep.subr.bf16.mxu0 %v536
        %618 = vmatpush2.bf16.msra.mxu0 %v535
        %619 = vmatprep.subr.bf16.mxu0 %v533
        %620 = vmatpush2.bf16.msra.mxu0 %v532
        %621 = vmatprep.subr.bf16.mxu0 %v530
        %622 = vmatpush2.bf16.msra.mxu0 %v529
        %623 = vmatprep.subr.bf16.mxu0 %v527
        %624 = vmatpush2.bf16.msra.mxu0 %v526
        %625 = vmatprep.subr.bf16.mxu0 %v524
        %626 = vmatpush2.bf16.msra.mxu0 %v523
        %627 = vmatprep.mubr.bf16.mxu0 %v332
        %628 = vmatmul.mubr.bf16.gmra.mxu0 %v331
        %v629 = vpop.f32.mrf.mxu0
        %v630 = vadd.f32 0.0, %v629
        %v631 = vpop.f32.mrf.mxu0
        %v632 = vadd.f32 0.0, %v631
        %v633 = vpop.f32.mrf.mxu0
        %v634 = vadd.f32 0.0, %v633
        %v635 = vpop.f32.mrf.mxu0
        %v636 = vadd.f32 0.0, %v635
        %637 = vmatprep.mubr.bf16.mxu0 %v334
        %638 = vmatmul.mubr.bf16.gmra.mxu0 %v333
        %v639 = vpop.f32.mrf.mxu0
        %v640 = vadd.f32 0.0, %v639
        %v641 = vpop.f32.mrf.mxu0
        %v642 = vadd.f32 0.0, %v641
        %v643 = vpop.f32.mrf.mxu0
        %v644 = vadd.f32 0.0, %v643
        %v645 = vpop.f32.mrf.mxu0
        %v646 = vadd.f32 0.0, %v645
        %647 = vdwg.mxu0
        %648 = vmatprep.subr.bf16.mxu0 0
        %649 = vmatpush1.bf16.msra.mxu0 %v522
        %650 = vmatprep.subr.bf16.mxu0 0
        %651 = vmatpush1.bf16.msra.mxu0 %v519
        %652 = vmatprep.subr.bf16.mxu0 0
        %653 = vmatpush1.bf16.msra.mxu0 %v516
        %654 = vmatprep.subr.bf16.mxu0 0
        %655 = vmatpush1.bf16.msra.mxu0 %v513
        %656 = vmatprep.subr.bf16.mxu0 0
        %657 = vmatpush1.bf16.msra.mxu0 %v510
        %658 = vmatprep.subr.bf16.mxu0 0
        %659 = vmatpush1.bf16.msra.mxu0 %v507
        %660 = vmatprep.subr.bf16.mxu0 0
        %661 = vmatpush1.bf16.msra.mxu0 %v504
        %662 = vmatprep.subr.bf16.mxu0 0
        %663 = vmatpush1.bf16.msra.mxu0 %v501
        %664 = vmatprep.subr.bf16.mxu0 0
        %665 = vmatpush2.bf16.msra.mxu0 %v546
        %666 = vmatprep.subr.bf16.mxu0 0
        %667 = vmatpush2.bf16.msra.mxu0 %v543
        %668 = vmatprep.subr.bf16.mxu0 0
        %669 = vmatpush2.bf16.msra.mxu0 %v540
        %670 = vmatprep.subr.bf16.mxu0 0
        %671 = vmatpush2.bf16.msra.mxu0 %v537
        %672 = vmatprep.subr.bf16.mxu0 0
        %673 = vmatpush2.bf16.msra.mxu0 %v534
        %674 = vmatprep.subr.bf16.mxu0 0
        %675 = vmatpush2.bf16.msra.mxu0 %v531
        %676 = vmatprep.subr.bf16.mxu0 0
        %677 = vmatpush2.bf16.msra.mxu0 %v528
        %678 = vmatprep.subr.bf16.mxu0 0
        %679 = vmatpush2.bf16.msra.mxu0 %v525
        %680 = vmatprep.mubr.bf16.mxu0 %v332
        %681 = vmatmul.mubr.bf16.gmra.mxu0 %v331
        %v682 = vpop.f32.mrf.mxu0
        %v683 = vadd.f32 0.0, %v682
        %v684 = vpop.f32.mrf.mxu0
        %v685 = vpop.f32.mrf.mxu0
        %v686 = vadd.f32 0.0, %v685
        %v687 = vpop.f32.mrf.mxu0
        %688 = vmatprep.mubr.bf16.mxu0 %v334
        %689 = vmatmul.mubr.bf16.gmra.mxu0 %v333
        %v690 = vpop.f32.mrf.mxu0
        %v691 = vadd.f32 0.0, %v690
        %v692 = vpop.f32.mrf.mxu0
        %v693 = vpop.f32.mrf.mxu0
        %v694 = vadd.f32 0.0, %v693
        %v695 = vpop.f32.mrf.mxu0
        %696 = vdwg.mxu0
        %v697 = vadd.f32 %v239, %v630
        %v698 = vadd.f32 %v240, %v632
        %v699 = vadd.f32 %v241, %v683
        %v700 = vadd.f32 %v242, %v634
        %v701 = vadd.f32 %v243, %v636
        %v702 = vadd.f32 %v244, %v686
        %v703 = vadd.f32 %v245, %v640
        %v704 = vadd.f32 %v246, %v642
        %v705 = vadd.f32 %v247, %v691
        %v706 = vadd.f32 %v248, %v644
        %v707 = vadd.f32 %v249, %v646
        %v708 = vadd.f32 %v250, %v694
        %709 = vst [vmem:[#allocation2] sm:$0xff] %v697
        %710 = vst [vmem:[#allocation2 + $0x8] sm:$0xff] %v698
        %711 = vst [vmem:[#allocation2 + $0x10] sm:$0xff] %v699
        %712 = vst [vmem:[#allocation2 + $0x18] sm:$0xff] %v700
        %713 = vst [vmem:[#allocation2 + $0x20] sm:$0xff] %v701
        %714 = vst [vmem:[#allocation2 + $0x28] sm:$0xff] %v702
        %715 = vst [vmem:[#allocation2 + $0x30] sm:$0xff] %v703
        %716 = vst [vmem:[#allocation2 + $0x38] sm:$0xff] %v704
        %717 = vst [vmem:[#allocation2 + $0x40] sm:$0xff] %v705
        %718 = vst [vmem:[#allocation2 + $0x48] sm:$0xff] %v706
        %719 = vst [vmem:[#allocation2 + $0x50] sm:$0xff] %v707
        %720 = vst [vmem:[#allocation2 + $0x58] sm:$0xff] %v708
        // Predicated region
        $region41: #{tpu_custom_call.1} parent=27 // pred_check
          %p721 = pneg %p223
        $region42: #{tpu_custom_call.1} parent=27 // pred_check_branch
          %723 = sbr.rel (%p721) target = $region44
        $region43: #{tpu_custom_call.1} parent=27 // pred_region
          %v724 = vld [vmem:[#allocation2] sm:$0xff]
          %v725 = vld [vmem:[#allocation2 + $0x8] sm:$0xff]
          %v726 = vld [vmem:[#allocation2 + $0x10] sm:$0xff]
          %v727 = vld [vmem:[#allocation2 + $0x18] sm:$0xff]
          %v728 = vld [vmem:[#allocation2 + $0x20] sm:$0xff]
          %v729 = vld [vmem:[#allocation2 + $0x28] sm:$0xff]
          %v730 = vld [vmem:[#allocation2 + $0x30] sm:$0xff]
          %v731 = vld [vmem:[#allocation2 + $0x38] sm:$0xff]
          %v732 = vld [vmem:[#allocation2 + $0x40] sm:$0xff]
          %v733 = vld [vmem:[#allocation2 + $0x48] sm:$0xff]
          %v734 = vld [vmem:[#allocation2 + $0x50] sm:$0xff]
          %v735 = vld [vmem:[#allocation2 + $0x58] sm:$0xff]
          %v736 = vpack.c.bf16 %v727, %v724
          %v737 = vpack.c.bf16 %v728, %v725
          %v738 = vpack.c.bf16 %v729, %v726
          %v739 = vpack.c.bf16 %v733, %v730
          %v740 = vpack.c.bf16 %v734, %v731
          %v741 = vpack.c.bf16 %v735, %v732
          %v748 = vunpack.c.l.b16 %v736
          %v749 = vunpack.c.l.b16 %v737
          %v750 = vunpack.c.l.b16 %v738
          %v751 = vunpack.c.h.b16 %v736
          %v752 = vunpack.c.h.b16 %v737
          %v753 = vunpack.c.h.b16 %v738
          %v754 = vunpack.c.l.b16 %v739
          %v755 = vunpack.c.l.b16 %v740
          %v756 = vunpack.c.l.b16 %v741
          %v757 = vunpack.c.h.b16 %v739
          %v758 = vunpack.c.h.b16 %v740
          %v759 = vunpack.c.h.b16 %v741
          %v760 = vpack.c.b16 %v749, %v748
          %v761 = vpack.c.b16 %v750, %v750
          %v762 = vpack.c.b16 %v752, %v751
          %v763 = vpack.c.b16 %v753, %v753
          %v764 = vpack.c.b16 %v755, %v754
          %v765 = vpack.c.b16 %v756, %v756
          %v766 = vpack.c.b16 %v758, %v757
          %v767 = vpack.c.b16 %v759, %v759
          %776 = vst [vmem:[%s215] sm:$0xff] %v760
          %777 = vst [vmem:[%s215 + $0x8] sm:$0xf] %v761
          %778 = vst [vmem:[%s215 + $0xc] sm:$0xff] %v762
          %779 = vst [vmem:[%s215 + $0x14] sm:$0xf] %v763
          %780 = vst [vmem:[%s215 + $0x18] sm:$0xff] %v764
          %781 = vst [vmem:[%s215 + $0x20] sm:$0xf] %v765
          %782 = vst [vmem:[%s215 + $0x24] sm:$0xff] %v766
          %783 = vst [vmem:[%s215 + $0x2c] sm:$0xf] %v767
        $region44: #{tpu_custom_call.1} parent=27 // pred_fallthru
          _
        %s784 = sand.u32 %s105, 1
        %s785 = scalar_lea.sflag [#allocation5], %s784
        %s786 = sand.u32 %s105, 1
        %s787 = smul.addr %s786, 48
        %s788 = scalar_lea.vmem [#allocation8], %s787
        // Predicated region
        $region45: #{tpu_custom_call.1} parent=27 // pred_check
          %p789 = pneg %p115
        $region46: #{tpu_custom_call.1} parent=27 // pred_check_branch
          %791 = sbr.rel (%p789) target = $region48
        $region47: #{tpu_custom_call.1} parent=27 // pred_region
          %s792 = smul.u32 4, %s25
          %s793 = smul.u32 3, %s26
          %s795 = ssub.s32 768, 768
          %796 = vsyncadd %s785, %s795
          %s797 = smul.addr %s792, 6
          %s798 = sadd.s32 %s793, %s797
          %s799 = smul.addr %s798, 64
          %s800 = scalar_lea.hbm %s2, %s799
          %s801 = sshll.u32 %s788, 4
          %s802 = int_to_ptr.vmem [resolvable:$true] %s801
          %807 = dma.vmem_to_hbm [thread:$0]  %s802, 768, %s800, %s785, 192, 384, 12
        $region48: #{tpu_custom_call.1} parent=27 // pred_fallthru
          _
      $region28: #{tpu_custom_call.1} parent=5 // pred_fallthru
        _
      %p808 = scmp.le.s32.totalorder 2, %s15
      // Predicated region
      $region49: #{tpu_custom_call.1} parent=5 // pred_check
        %p809 = pneg %p808
      $region50: #{tpu_custom_call.1} parent=5 // pred_check_branch
        %811 = sbr.rel (%p809) target = $region52
      $region51: #{tpu_custom_call.1} parent=5 // pred_region
        %s812 = ssub.s32 %s15, 2
        // Predicated region
        $region53: #{tpu_custom_call.1} parent=51 // pred_check
          %p813 = pneg %p121
        $region54: #{tpu_custom_call.1} parent=51 // pred_check_branch
          %815 = sbr.rel (%p813) target = $region56
        $region55: #{tpu_custom_call.1} parent=51 // pred_region
          %s816 = sand.u32 %s106, 1
          %s817 = scalar_lea.sflag [#allocation5], %s816
          %s818 = sand.u32 %s106, 1
          %s819 = smul.addr %s818, 48
          %s820 = scalar_lea.vmem [#allocation8], %s819
          %821 = dma.done %s817, 768
        $region56: #{tpu_custom_call.1} parent=51 // pred_fallthru
          _
      $region52: #{tpu_custom_call.1} parent=5 // pred_fallthru
        _
    $region6: #{tpu_custom_call.1} parent=1 // loop_footer
      %s19 = sadd.s32 1, %s15
    $region7: #{tpu_custom_call.1} parent=1 // loop_footer_branch
      %14 = sbr.rel target = $region3
    $region8: #{tpu_custom_call.1} parent=1 // loop_exit
      _
    %822 = vsyncpa [#allocation4], 1
    %s823 = scalar_lea.sflag [#allocation4], 1
    %824 = vsyncpa %s823, 1
    %825 = vsyncpa [#allocation7], 1
    %s826 = scalar_lea.sflag [#allocation7], 1
    %827 = vsyncpa %s826, 1
    %828 = vsyncpa [#allocation5], 1
    %s829 = scalar_lea.sflag [#allocation5], 1
    %830 = vsyncpa %s829, 1

</llo_original>
